<compile_context>
chip_gen: v5e
topology: v5e:2x2
jax: 0.10.0
libtpu: 0.0.40
codegen_flags: <defaults>
</compile_context>

<pallas_src>
import functools

import jax
import jax.numpy as jnp
from jax import lax
from jax.experimental import pallas as pl
from jax.experimental.pallas import tpu as pltpu

_EPS = 1e-5
_LANE = 128


# ----------------------------------------------------------------------------- utils
def _round_up(v, m):
    return ((v + m - 1) // m) * m


def _sublane_multiple(dtype):
    itemsize = jnp.dtype(dtype).itemsize
    return 8 * max(1, 4 // max(itemsize, 1))   # 8 (f32), 16 (bf16), 32 (int8/fp8)


def _pad2(a, rows, cols):
    if a.shape == (rows, cols):
        return a
    return jnp.zeros((rows, cols), a.dtype).at[: a.shape[0], : a.shape[1]].set(a)


def _pick_tile(dim, candidates=(512, 256, 128)):
    for t in candidates:
        if dim % t == 0:
            return t
    return dim


def _vmem_limits():
    """(vmem_limit_bytes for Mosaic, usable budget for our own fit check)."""
    phys = 64 * 1024 * 1024                     # conservative default (v7x per-TC)
    try:
        info = pltpu.get_tpu_info()
        for attr in ("vmem_capacity_bytes", "vmem_bytes", "vmem_size_bytes"):
            v = getattr(info, attr, None)
            if v:
                phys = int(v)
                break
    except Exception:
        pass
    limit = min(int(phys * 0.85), phys - 8 * 1024 * 1024)   # leave headroom for scratch
    budget = int(limit * 0.9)
    return limit, budget


def _mxu_dot(a, b, mxu_dtype):
    if mxu_dtype is not None:
        a = a.astype(mxu_dtype)
        b = b.astype(mxu_dtype)
    return jnp.dot(a, b, preferred_element_type=jnp.float32)


# --------------------------------------------------------------------- parameter prep
def prepare_nonlinear_params(w, b, gamma, beta):
    """Transpose + pad weights once (cache across calls).

    w: (Cout, Cin); b, gamma, beta: (Cout,).
    Returns wT_pad (Cin_pad, Cout_pad) and params (3, Cout_pad) = [bias; gamma; beta].
    """
    c_out, c_in = w.shape
    cin_pad = _round_up(max(c_in, _LANE), _LANE)
    cout_pad = _round_up(max(c_out, _LANE), _LANE)
    wT = _pad2(w.T, cin_pad, cout_pad)
    params = jnp.zeros((3, cout_pad), jnp.float32)
    params = params.at[0, :c_out].set(b.astype(jnp.float32))
    params = params.at[1, :c_out].set(gamma.astype(jnp.float32))
    params = params.at[2, :c_out].set(beta.astype(jnp.float32))
    return wT, params


# --------------------------------------------------------------- Path A: fused kernel
def _fused_kernel(*refs, n_valid, has_mask, mxu_dtype):
    if has_mask:
        x_ref, wT_ref, p_ref, mask_ref, o_ref = refs
    else:
        x_ref, wT_ref, p_ref, o_ref = refs
        mask_ref = None

    y = _mxu_dot(x_ref[...], wT_ref[...], mxu_dtype)        # (Np, TN) f32
    y = jnp.maximum(y + p_ref[0:1, :], 0.0)                  # bias + ReLU
    if has_mask:
        y = y * mask_ref[...]                                # zero padded batch rows

    inv_n = jnp.float32(1.0 / n_valid)
    mean = jnp.sum(y, axis=0, keepdims=True) * inv_n         # (1, TN)
    d = y - mean
    if has_mask:
        d = d * mask_ref[...]
    var = jnp.sum(d * d, axis=0, keepdims=True) * inv_n      # centered (two-pass) var
    inv_std = lax.rsqrt(var + jnp.float32(_EPS))
    scale = p_ref[1:2, :] * inv_std
    shift = p_ref[2:3, :] - mean * scale
    o_ref[...] = (y * scale + shift).astype(o_ref.dtype)


def _pick_fused_tn(n_pad, cin_pad, cout_pad, x_isz, w_isz, o_isz, budget):
    x_bytes = 2 * n_pad * cin_pad * x_isz            # conservative: double-buffer alloc
    mask_bytes = 2 * n_pad * _LANE * 4
    for tn in (1024, 512, 256, 128):
        if cout_pad % tn:
            continue
        w_bytes = 2 * cin_pad * tn * w_isz
        out_bytes = 2 * n_pad * tn * o_isz
        tmp_bytes = 2 * n_pad * tn * 4               # epilogue f32 temporaries
        p_bytes = 2 * 8 * tn * 4
        if x_bytes + mask_bytes + w_bytes + out_bytes + tmp_bytes + p_bytes <= budget:
            return tn
    return None


def _fused_call(x, wT, params, n, n_pad, c_out, cin_pad, cout_pad, tn, vmem_limit,
                mxu_dtype):
    xp = _pad2(x, n_pad, cin_pad)
    has_mask = n_pad != n

    inputs = [xp, wT, params]
    in_specs = [
        pl.BlockSpec((n_pad, cin_pad), lambda j: (0, 0)),   # x: fully VMEM-resident
        pl.BlockSpec((cin_pad, tn), lambda j: (0, j)),      # W^T tile
        pl.BlockSpec((3, tn), lambda j: (0, j)),            # [bias; gamma; beta]
    ]
    if has_mask:
        mask = jnp.zeros((n_pad, 1), jnp.float32).at[:n, :].set(1.0)
        inputs.append(mask)
        in_specs.append(pl.BlockSpec((n_pad, 1), lambda j: (0, 0)))

    kernel = functools.partial(_fused_kernel, n_valid=n, has_mask=has_mask,
                               mxu_dtype=mxu_dtype)
    out = pl.pallas_call(
        kernel,
        out_shape=jax.ShapeDtypeStruct((n_pad, cout_pad), x.dtype),
        grid_spec=pltpu.PrefetchScalarGridSpec(
            num_scalar_prefetch=0,
            grid=(cout_pad // tn,),
            in_specs=in_specs,
            out_specs=pl.BlockSpec((n_pad, tn), lambda j: (0, j)),
        ),
        compiler_params=pltpu.CompilerParams(
            dimension_semantics=("parallel",),
            vmem_limit_bytes=vmem_limit,
        ),
    )(*inputs)

    if n_pad == n and cout_pad == c_out:
        return out
    return out[:n, :c_out]


# ------------------------------------------------------ Path B: N-tiled, two kernels
def _tiled_linear_relu_kernel(*refs, has_mask, mxu_dtype):
    if has_mask:
        x_ref, wT_ref, p_ref, mask_ref, y_ref, sum_ref, sumsq_ref, acc_ref = refs
    else:
        x_ref, wT_ref, p_ref, y_ref, sum_ref, sumsq_ref, acc_ref = refs
        mask_ref = None

    i = pl.program_id(1)                       # N tile
    k = pl.program_id(2)                       # K (reduction) tile, innermost

    @pl.when(k == 0)
    def _():
        acc_ref[...] = jnp.zeros_like(acc_ref)

    @pl.when(jnp.logical_and(i == 0, k == 0))
    def _():
        sum_ref[...] = jnp.zeros_like(sum_ref)
        sumsq_ref[...] = jnp.zeros_like(sumsq_ref)

    acc_ref[...] += _mxu_dot(x_ref[...], wT_ref[...], mxu_dtype)

    @pl.when(k == pl.num_programs(2) - 1)
    def _():
        y = jnp.maximum(acc_ref[...] + p_ref[0:1, :], 0.0)
        if has_mask:
            y = y * mask_ref[...]
        y_ref[...] = y.astype(y_ref.dtype)
        sum_ref[...] += jnp.sum(y, axis=0, keepdims=True)
        sumsq_ref[...] += jnp.sum(y * y, axis=0, keepdims=True)


def _scale_shift_kernel(y_ref, ss_ref, o_ref):
    y = y_ref[...].astype(jnp.float32)
    o_ref[...] = (y * ss_ref[0:1, :] + ss_ref[1:2, :]).astype(o_ref.dtype)


def _tiled_call(x, wT, params, n, c_out, cin_pad, cout_pad, sub, vmem_limit, tiles,
                mxu_dtype):
    if tiles is not None:
        tm, tn, tk = tiles
    else:
        tm = min(512, _round_up(max(n, sub), sub))
        tn = _pick_tile(cout_pad)
        tk = _pick_tile(cin_pad)
    n_pad = _round_up(max(n, tm), tm)
    xp = _pad2(x, n_pad, cin_pad)
    has_mask = n_pad != n

    inputs = [xp, wT, params]
    in_specs = [
        pl.BlockSpec((tm, tk), lambda j, i, k: (i, k)),
        pl.BlockSpec((tk, tn), lambda j, i, k: (k, j)),
        pl.BlockSpec((3, tn), lambda j, i, k: (0, j)),
    ]
    if has_mask:
        mask = jnp.zeros((n_pad, 1), jnp.float32).at[:n, :].set(1.0)
        inputs.append(mask)
        in_specs.append(pl.BlockSpec((tm, 1), lambda j, i, k: (i, 0)))

    kernel = functools.partial(_tiled_linear_relu_kernel, has_mask=has_mask,
                               mxu_dtype=mxu_dtype)
    y, s, ss = pl.pallas_call(
        kernel,
        out_shape=(
            jax.ShapeDtypeStruct((n_pad, cout_pad), x.dtype),
            jax.ShapeDtypeStruct((1, cout_pad), jnp.float32),
            jax.ShapeDtypeStruct((1, cout_pad), jnp.float32),
        ),
        grid_spec=pltpu.PrefetchScalarGridSpec(
            num_scalar_prefetch=0,
            grid=(cout_pad // tn, n_pad // tm, cin_pad // tk),
            in_specs=in_specs,
            out_specs=[
                pl.BlockSpec((tm, tn), lambda j, i, k: (i, j)),
                pl.BlockSpec((1, tn), lambda j, i, k: (0, j)),
                pl.BlockSpec((1, tn), lambda j, i, k: (0, j)),
            ],
            scratch_shapes=[pltpu.VMEM((tm, tn), jnp.float32)],
        ),
        compiler_params=pltpu.CompilerParams(
            dimension_semantics=("parallel", "arbitrary", "arbitrary"),
            vmem_limit_bytes=vmem_limit,
        ),
    )(*inputs)

    # Tiny per-feature epilogue (Cout-sized vectors) in plain XLA.
    inv_n = jnp.float32(1.0 / n)
    mean = s * inv_n
    var = jnp.maximum(ss * inv_n - mean * mean, 0.0)          # biased batch variance
    inv_std = lax.rsqrt(var + jnp.float32(_EPS))
    scale = params[1:2, :] * inv_std
    shift = params[2:3, :] - mean * scale
    scale_shift = jnp.concatenate([scale, shift], axis=0)     # (2, Cout_pad)

    out = pl.pallas_call(
        _scale_shift_kernel,
        out_shape=jax.ShapeDtypeStruct((n_pad, cout_pad), x.dtype),
        grid_spec=pltpu.PrefetchScalarGridSpec(
            num_scalar_prefetch=0,
            grid=(n_pad // tm, cout_pad // tn),
            in_specs=[
                pl.BlockSpec((tm, tn), lambda i, j: (i, j)),
                pl.BlockSpec((2, tn), lambda i, j: (0, j)),
            ],
            out_specs=pl.BlockSpec((tm, tn), lambda i, j: (i, j)),
        ),
        compiler_params=pltpu.CompilerParams(
            dimension_semantics=("parallel", "parallel"),
            vmem_limit_bytes=vmem_limit,
        ),
    )(y, scale_shift)

    if n_pad == n and cout_pad == c_out:
        return out
    return out[:n, :c_out]


# ----------------------------------------------------------------------------- entry
def nonlinear_forward(x, wT_pad, params, c_out, *, force_tiled=False, tiles=None,
                      mxu_dtype=None):
    """Linear -> ReLU -> BatchNorm1d (training-mode batch stats).

    x: (N, Cin); wT_pad, params: from prepare_nonlinear_params. Returns (N, c_out).
    """
    n, _ = x.shape
    cin_pad, cout_pad = wT_pad.shape
    assert params.shape == (3, cout_pad)

    sub = _sublane_multiple(x.dtype)
    vmem_limit, budget = _vmem_limits()

    if not force_tiled:
        n_pad = _round_up(max(n, sub), sub)
        tn = _pick_fused_tn(
            n_pad, cin_pad, cout_pad,
            jnp.dtype(x.dtype).itemsize, jnp.dtype(wT_pad.dtype).itemsize,
            jnp.dtype(x.dtype).itemsize, budget)
        if tn is not None:
            return _fused_call(x, wT_pad, params, n, n_pad, c_out, cin_pad, cout_pad,
                               tn, vmem_limit, mxu_dtype)
    return _tiled_call(x, wT_pad, params, n, c_out, cin_pad, cout_pad, sub,
                       vmem_limit, tiles, mxu_dtype)


def nonlinear_apply(x, w, b, gamma, beta, **kwargs):
    wT, params = prepare_nonlinear_params(w, b, gamma, beta)
    return nonlinear_forward(x, wT, params, w.shape[0], **kwargs)


def _reference_forward(x, w, b, gamma, beta):
    y = jnp.maximum(x @ w.T + b, 0.0)
    mean = jnp.mean(y, axis=0, keepdims=True)
    var = jnp.mean((y - mean) ** 2, axis=0, keepdims=True)
    return gamma * (y - mean) / jnp.sqrt(var + _EPS) + beta


# ------------------------------------------------------------------------------ main
if __name__ == "__main__":
    key = jax.random.PRNGKey(0)
    keys = jax.random.split(key, 12)

    def init_params(kw_, kb_, kg_, kbe_, c_in, c_out):
        bound = 1.0 / (c_in ** 0.5)
        w = jax.random.uniform(kw_, (c_out, c_in), jnp.float32, -bound, bound)
        b = jax.random.uniform(kb_, (c_out,), jnp.float32, -bound, bound)
        gamma = 1.0 + 0.1 * jax.random.normal(kg_, (c_out,), jnp.float32)
        beta = 0.1 * jax.random.normal(kbe_, (c_out,), jnp.float32)
        return w, b, gamma, beta

    # Case 1: fused path (x fully VMEM-resident), sublane-aligned batch.
    w, b, gamma, beta = init_params(keys[0], keys[1], keys[2], keys[3], 16, 32)
    wT, params = prepare_nonlinear_params(w, b, gamma, beta)
    x = jax.random.normal(keys[4], (8, 16), jnp.float32)
    out = jax.block_until_ready(nonlinear_forward(x, wT, params, 32))
    ref = _reference_forward(x, w, b, gamma, beta)
    assert out.shape == (8, 32)
    assert jnp.allclose(out, ref, atol=1e-3, rtol=1e-3), "fused path mismatch"

    # Case 2: fused path with a ragged batch (row mask, N=10 -> padded to 16).
    x2 = jax.random.normal(keys[5], (10, 16), jnp.float32)
    out2 = jax.block_until_ready(nonlinear_forward(x2, wT, params, 32))
    ref2 = _reference_forward(x2, w, b, gamma, beta)
    assert out2.shape == (10, 32)
    assert jnp.allclose(out2, ref2, atol=1e-3, rtol=1e-3), "masked fused path mismatch"

    # Case 3: forced N-tiled two-kernel path with multiple N / K / Cout tiles and a
    # ragged batch (N=22 -> padded to 24, tm=8 -> 3 N tiles; Cin=200 -> 2 K tiles;
    # Cout=160 -> 2 Cout tiles).
    w3, b3, g3, be3 = init_params(keys[6], keys[7], keys[8], keys[9], 200, 160)
    wT3, params3 = prepare_nonlinear_params(w3, b3, g3, be3)
    x3 = jax.random.normal(keys[10], (22, 200), jnp.float32)
    out3 = jax.block_until_ready(
        nonlinear_forward(x3, wT3, params3, 160, force_tiled=True, tiles=(8, 128, 128)))
    ref3 = _reference_forward(x3, w3, b3, g3, be3)
    assert out3.shape == (22, 160)
    assert jnp.allclose(out3, ref3, atol=1e-2, rtol=1e-2), "tiled path mismatch"

    print("KERNEL_OK")
</pallas_src>

<mosaic_0001>
module attributes {stable_mosaic.version = 11 : i64} {
  func.func @_fused_kernel(%arg0: i32, %arg1: memref<8x128xf32, #tpu.memory_space<vmem>>, %arg2: memref<128x128xf32, #tpu.memory_space<vmem>>, %arg3: memref<3x128xf32, #tpu.memory_space<vmem>>, %arg4: memref<8x128xf32, #tpu.memory_space<vmem>>) attributes {dimension_semantics = [#tpu.dimension_semantics<parallel>], iteration_bounds = array<i64: 1>, scalar_prefetch = 0 : i64, scratch_operands = 0 : i64, tpu.core_type = #tpu.core_type<tc>, window_params = [{pipeline_mode = #tpu.pipeline_mode<synchronous>, transform_indices = @transform_0, window_bounds = array<i64: 8, 128>}, {transform_indices = @transform_1, window_bounds = array<i64: 128, 128>}, {transform_indices = @transform_2, window_bounds = array<i64: 3, 128>}, {transform_indices = @transform_3, window_bounds = array<i64: 8, 128>}]} {
    %c0 = arith.constant 0 : index
    %c0_0 = arith.constant 0 : index
    %0 = vector.load %arg1[%c0, %c0_0] : memref<8x128xf32, #tpu.memory_space<vmem>>, vector<8x128xf32>
    %c0_1 = arith.constant 0 : index
    %c0_2 = arith.constant 0 : index
    %1 = vector.load %arg2[%c0_1, %c0_2] : memref<128x128xf32, #tpu.memory_space<vmem>>, vector<128x128xf32>
    %cst = arith.constant dense<0.000000e+00> : vector<8x128xf32>
    %2 = tpu.matmul %0, %1, %cst {dimension_numbers = #tpu.dot_dimension_numbers<[1], [0], [0], [1], [0, 0, 1, 1], [], []>} : vector<8x128xf32>, vector<128x128xf32>, vector<8x128xf32> -> vector<8x128xf32>
    %c0_3 = arith.constant 0 : index
    %c0_4 = arith.constant 0 : index
    %3 = vector.load %arg3[%c0_3, %c0_4] : memref<3x128xf32, #tpu.memory_space<vmem>>, vector<1x128xf32>
    %4 = vector.broadcast %3 : vector<1x128xf32> to vector<8x128xf32>
    %5 = arith.addf %2, %4 : vector<8x128xf32>
    %cst_5 = arith.constant 0.000000e+00 : f32
    %6 = vector.broadcast %cst_5 : f32 to vector<8x128xf32>
    %7 = arith.maximumf %5, %6 : vector<8x128xf32>
    %cst_6 = arith.constant dense<0.000000e+00> : vector<128xf32>
    %8 = vector.multi_reduction <add>, %7, %cst_6 [0] : vector<8x128xf32> to vector<128xf32>
    %9 = vector.shape_cast %8 : vector<128xf32> to vector<1x128xf32>
    %cst_7 = arith.constant 1.250000e-01 : f32
    %10 = vector.broadcast %cst_7 : f32 to vector<1x128xf32>
    %11 = arith.mulf %9, %10 : vector<1x128xf32>
    %12 = vector.broadcast %11 : vector<1x128xf32> to vector<8x128xf32>
    %13 = arith.subf %7, %12 : vector<8x128xf32>
    %14 = arith.mulf %13, %13 : vector<8x128xf32>
    %cst_8 = arith.constant dense<0.000000e+00> : vector<128xf32>
    %15 = vector.multi_reduction <add>, %14, %cst_8 [0] : vector<8x128xf32> to vector<128xf32>
    %16 = vector.shape_cast %15 : vector<128xf32> to vector<1x128xf32>
    %cst_9 = arith.constant 1.250000e-01 : f32
    %17 = vector.broadcast %cst_9 : f32 to vector<1x128xf32>
    %18 = arith.mulf %16, %17 : vector<1x128xf32>
    %cst_10 = arith.constant 9.99999974E-6 : f32
    %19 = vector.broadcast %cst_10 : f32 to vector<1x128xf32>
    %20 = arith.addf %18, %19 : vector<1x128xf32>
    %21 = math.rsqrt %20 : vector<1x128xf32>
    %c1 = arith.constant 1 : index
    %c0_11 = arith.constant 0 : index
    %22 = vector.load %arg3[%c1, %c0_11] : memref<3x128xf32, #tpu.memory_space<vmem>>, vector<1x128xf32>
    %23 = arith.mulf %22, %21 : vector<1x128xf32>
    %c2 = arith.constant 2 : index
    %c0_12 = arith.constant 0 : index
    %24 = vector.load %arg3[%c2, %c0_12] : memref<3x128xf32, #tpu.memory_space<vmem>>, vector<1x128xf32>
    %25 = arith.mulf %11, %23 : vector<1x128xf32>
    %26 = arith.subf %24, %25 : vector<1x128xf32>
    %27 = vector.broadcast %23 : vector<1x128xf32> to vector<8x128xf32>
    %28 = arith.mulf %7, %27 : vector<8x128xf32>
    %29 = vector.broadcast %26 : vector<1x128xf32> to vector<8x128xf32>
    %30 = arith.addf %28, %29 : vector<8x128xf32>
    %c0_13 = arith.constant 0 : index
    %c0_14 = arith.constant 0 : index
    %31 = vector.load %arg4[%c0_13, %c0_14] : memref<8x128xf32, #tpu.memory_space<vmem>>, vector<8x128xf32>
    tpu.vector_store %arg4[%c0_13, %c0_14], %30 {strides = array<i32>} : memref<8x128xf32, #tpu.memory_space<vmem>>, vector<8x128xf32>,
    return
  }
  func.func @transform_0(%arg0: i32) -> (i32, i32) {
    %c0_i32 = arith.constant 0 : i32
    %c0_i32_0 = arith.constant 0 : i32
    %c0_i32_1 = arith.constant 0 : i32
    return %c0_i32, %c0_i32_0 : i32, i32
  }
  func.func @transform_1(%arg0: i32) -> (i32, i32) {
    %c0_i32 = arith.constant 0 : i32
    %c0_i32_0 = arith.constant 0 : i32
    return %c0_i32, %arg0 : i32, i32
  }
  func.func @transform_2(%arg0: i32) -> (i32, i32) {
    %c0_i32 = arith.constant 0 : i32
    %c0_i32_0 = arith.constant 0 : i32
    return %c0_i32, %arg0 : i32, i32
  }
  func.func @transform_3(%arg0: i32) -> (i32, i32) {
    %c0_i32 = arith.constant 0 : i32
    %c0_i32_0 = arith.constant 0 : i32
    return %c0_i32, %arg0 : i32, i32
  }
}

</mosaic_0001>

<llo_original>
// kernel: tpu_custom_call.1
$region0: #{tpu_custom_call.1}
  #allocation0 [shape = 'u32[]', space=smem, size = 0x4, offset = 0x4, fixed_abs, tag = 'smem constant byte address 0x4 - core index']
  #allocation1 [shape = 'u32[72,128]{1,0:T(1,128)}', space=vmem, size = 0x9000, scoped, tag = 'internal scratch']
  %s0 = inlined_call_operand.hbm [shape: f32[8,128], index: 0, kind: input, shape index: {}]
  %s1 = inlined_call_operand.hbm [shape: f32[128,128], index: 1, kind: input, shape index: {}]
  %s2 = inlined_call_operand.hbm [shape: f32[3,128], index: 2, kind: input, shape index: {}]
  %s3 = inlined_call_operand.hbm [shape: f32[8,128], index: 3, kind: output, shape index: {}]
  %s4 = sld [smem:[#allocation0]]
  $region34: #{tpu_custom_call.1} parent=0
    _
  %s6 = ssub.s32 1, %s4
  %s7 = scalar_select 0, %s6, %s4
  $region1: #{tpu_custom_call.1} parent=0
    #allocation2 [shape = 'u8[4096]{0}', space=vmem, size = 0x1000, scoped, tag = 'input window, operand 0, single buffered']
    #allocation3 [shape = 's32[1]{0}', space=sflag, size = 0x4, scoped, tag = 'scoped memory for tpu_custom_call.1']
    #allocation4 [shape = 's32[1]{0}', space=sflag, size = 0x4, scoped, tag = 'scoped memory for tpu_custom_call.1']
    #allocation5 [shape = 'u8[65536]{0}', space=vmem, size = 0x10000, scoped, tag = 'input window, operand 1, single buffered']
    #allocation6 [shape = 's32[1]{0}', space=sflag, size = 0x4, scoped, tag = 'scoped memory for tpu_custom_call.1']
    #allocation7 [shape = 'u8[2048]{0}', space=vmem, size = 0x800, scoped, tag = 'input window, operand 2, single buffered']
    #allocation8 [shape = 'u8[4096]{0}', space=vmem, size = 0x1000, scoped, tag = 'output window, operand 0, single buffered']
    %8 = vsyncpa [#allocation3], 0
    %9 = vsyncpa [#allocation6], 0
    %10 = vsyncpa [#allocation4], 0
    // Predicated region
    $region2: #{tpu_custom_call.1} parent=1 // pred_check
      _
    $region3: #{tpu_custom_call.1} parent=1 // pred_check_branch
      %12 = sbr.rel (0) target = $region5
    $region4: #{tpu_custom_call.1} parent=1 // pred_region
      %14 = vsyncadd [#allocation3], 0
      %s16 = sshll.u32 %s0, 4
      %s17 = int_to_ptr.hbm [resolvable:$true] %s16
      %s18 = sshll.u32 [#allocation2], 4
      %s19 = int_to_ptr.vmem [resolvable:$true] %s18
      %21 = dma.hbm_to_vmem [thread:$0]  %s17, 128, %s19, [#allocation3]
    $region5: #{tpu_custom_call.1} parent=1 // pred_fallthru
      _
    // Predicated region
    $region6: #{tpu_custom_call.1} parent=1 // pred_check
      _
    $region7: #{tpu_custom_call.1} parent=1 // pred_check_branch
      %23 = sbr.rel (0) target = $region9
    $region8: #{tpu_custom_call.1} parent=1 // pred_region
      %25 = vsyncadd [#allocation6], 0
      %s26 = sshll.u32 %s1, 4
      %s27 = int_to_ptr.hbm [resolvable:$true] %s26
      %s28 = sshll.u32 [#allocation5], 4
      %s29 = int_to_ptr.vmem [resolvable:$true] %s28
      %34 = dma.hbm_to_vmem [thread:$0]  %s27, 2048, %s29, [#allocation6], 128, 128, 8
    $region9: #{tpu_custom_call.1} parent=1 // pred_fallthru
      _
    // Predicated region
    $region10: #{tpu_custom_call.1} parent=1 // pred_check
      _
    $region11: #{tpu_custom_call.1} parent=1 // pred_check_branch
      %36 = sbr.rel (0) target = $region13
    $region12: #{tpu_custom_call.1} parent=1 // pred_region
      %38 = vsyncadd [#allocation6], 0
      %s40 = sshll.u32 %s2, 4
      %s41 = int_to_ptr.hbm [resolvable:$true] %s40
      %s42 = sshll.u32 [#allocation7], 4
      %s43 = int_to_ptr.vmem [resolvable:$true] %s42
      %45 = dma.hbm_to_vmem [thread:$0]  %s41, 64, %s43, [#allocation6]
    $region13: #{tpu_custom_call.1} parent=1 // pred_fallthru
      _
    // Predicated region
    $region14: #{tpu_custom_call.1} parent=1 // pred_check
      _
    $region15: #{tpu_custom_call.1} parent=1 // pred_check_branch
      %47 = sbr.rel (0) target = $region17
    $region16: #{tpu_custom_call.1} parent=1 // pred_region
      %49 = dma.done [#allocation3], 128
    $region17: #{tpu_custom_call.1} parent=1 // pred_fallthru
      _
    // Predicated region
    $region18: #{tpu_custom_call.1} parent=1 // pred_check
      _
    $region19: #{tpu_custom_call.1} parent=1 // pred_check_branch
      %51 = sbr.rel (0) target = $region21
    $region20: #{tpu_custom_call.1} parent=1 // pred_region
      %53 = dma.done [#allocation6], 2048
    $region21: #{tpu_custom_call.1} parent=1 // pred_fallthru
      _
    // Predicated region
    $region22: #{tpu_custom_call.1} parent=1 // pred_check
      _
    $region23: #{tpu_custom_call.1} parent=1 // pred_check_branch
      %55 = sbr.rel (0) target = $region25
    $region24: #{tpu_custom_call.1} parent=1 // pred_region
      %57 = dma.done [#allocation6], 64
    $region25: #{tpu_custom_call.1} parent=1 // pred_fallthru
      _
    %v58 = vld [vmem:[#allocation2] sm:$0xff]
    %v59 = vld [vmem:[#allocation5] sm:$0xff]
    %v60 = vld [vmem:[#allocation5 + $0x8] sm:$0xff]
    %v61 = vld [vmem:[#allocation5 + $0x10] sm:$0xff]
    %v62 = vld [vmem:[#allocation5 + $0x18] sm:$0xff]
    %v63 = vld [vmem:[#allocation5 + $0x20] sm:$0xff]
    %v64 = vld [vmem:[#allocation5 + $0x28] sm:$0xff]
    %v65 = vld [vmem:[#allocation5 + $0x30] sm:$0xff]
    %v66 = vld [vmem:[#allocation5 + $0x38] sm:$0xff]
    %v67 = vld [vmem:[#allocation5 + $0x40] sm:$0xff]
    %v68 = vld [vmem:[#allocation5 + $0x48] sm:$0xff]
    %v69 = vld [vmem:[#allocation5 + $0x50] sm:$0xff]
    %v70 = vld [vmem:[#allocation5 + $0x58] sm:$0xff]
    %v71 = vld [vmem:[#allocation5 + $0x60] sm:$0xff]
    %v72 = vld [vmem:[#allocation5 + $0x68] sm:$0xff]
    %v73 = vld [vmem:[#allocation5 + $0x70] sm:$0xff]
    %v74 = vld [vmem:[#allocation5 + $0x78] sm:$0xff]
    %v75 = vld [vmem:[#allocation7] sm:$0x1]
    %v76 = vperm.slane %v75, 0
    %77 = vmatpush.msra.mxu0 %v74
    %78 = vmatpush.msra.mxu0 %v73
    %79 = vmatpush.msra.mxu0 %v72
    %80 = vmatpush.msra.mxu0 %v71
    %81 = vmatpush.msra.mxu0 %v70
    %82 = vmatpush.msra.mxu0 %v69
    %83 = vmatpush.msra.mxu0 %v68
    %84 = vmatpush.msra.mxu0 %v67
    %85 = vmatpush.msra.mxu0 %v66
    %86 = vmatpush.msra.mxu0 %v65
    %87 = vmatpush.msra.mxu0 %v64
    %88 = vmatpush.msra.mxu0 %v63
    %89 = vmatpush.msra.mxu0 %v62
    %90 = vmatpush.msra.mxu0 %v61
    %91 = vmatpush.msra.mxu0 %v60
    %92 = vmatpush.msra.mxu0 %v59
    %93 = vmatmul.f32.gmra.mxu0 %v58
    %v94 = vpop.f32.mrf.mxu0
    %v95 = vadd.f32 %v76, %v94
    %96 = vdwg.mxu0
    %v97 = vmax.f32 %v95, 0.0
    %v98 = vrot.slane %v97, 4
    %v99 = vadd.f32 %v97, %v98
    %v100 = vrot.slane %v99, 2
    %v101 = vadd.f32 %v99, %v100
    %v102 = vrot.slane %v101, 1
    %v103 = vadd.f32 %v101, %v102
    %v104 = vmul.f32 %v103, 0.125
    %v105 = vsub.f32 %v97, %v104
    %v106 = vmul.f32 %v105, %v105
    %v107 = vrot.slane %v106, 4
    %v108 = vadd.f32 %v106, %v107
    %v109 = vrot.slane %v108, 2
    %v110 = vadd.f32 %v108, %v109
    %v111 = vrot.slane %v110, 1
    %v112 = vadd.f32 %v110, %v111
    %v113 = vmul.f32 %v112, 0.125
    %v114 = vadd.f32 %v113, 1e-05
    %v115 = vrsqrt.pop %v114
    %v116 = vmul.f32 %v115, %v114
    %v117 = vmul.f32 %v116, %v115
    %v118 = vmul.f32 0.5, %v117
    %v119 = vsub.f32 1.5, %v118
    %v120 = vmul.f32 %v115, %v119
    %vm121 = vweird.f32 %v114
    %vm122 = vweird.f32 %v115
    %vm123 = vmor %vm121, %vm122
    %v124 = vsel %vm123, %v115, %v120
    %v125 = vld [vmem:[#allocation7 + $0x1] sm:$0x1]
    %v126 = vmul.f32 %v125, %v124
    %v127 = vld [vmem:[#allocation7 + $0x2] sm:$0x1]
    %v128 = vmul.f32 %v104, %v126
    %v129 = vsub.f32 %v127, %v128
    %v130 = vperm.slane %v126, 0
    %v131 = vmul.f32 %v97, %v130
    %v132 = vperm.slane %v129, 0
    %v133 = vadd.f32 %v131, %v132
    %134 = vst [vmem:[#allocation8] sm:$0xff] %v133
    // Predicated region
    $region26: #{tpu_custom_call.1} parent=1 // pred_check
      _
    $region27: #{tpu_custom_call.1} parent=1 // pred_check_branch
      %136 = sbr.rel (0) target = $region29
    $region28: #{tpu_custom_call.1} parent=1 // pred_region
      %138 = vsyncadd [#allocation4], 0
      %s140 = sshll.u32 [#allocation8], 4
      %s141 = int_to_ptr.vmem [resolvable:$true] %s140
      %s142 = sshll.u32 %s3, 4
      %s143 = int_to_ptr.hbm [resolvable:$true] %s142
      %145 = dma.vmem_to_hbm [thread:$0]  %s141, 128, %s143, [#allocation4]
    $region29: #{tpu_custom_call.1} parent=1 // pred_fallthru
      _
    // Predicated region
    $region30: #{tpu_custom_call.1} parent=1 // pred_check
      _
    $region31: #{tpu_custom_call.1} parent=1 // pred_check_branch
      %147 = sbr.rel (0) target = $region33
    $region32: #{tpu_custom_call.1} parent=1 // pred_region
      %149 = dma.done [#allocation4], 128
    $region33: #{tpu_custom_call.1} parent=1 // pred_fallthru
      _
    %150 = vsyncpa [#allocation3], 1
    %151 = vsyncpa [#allocation6], 1
    %152 = vsyncpa [#allocation4], 1

</llo_original>
